<compile_context>
chip_gen: v7x
topology: tpu7x:2x2x1
jax: 0.10.0
libtpu: 0.0.40
codegen_flags: <defaults>
</compile_context>

<pallas_src>
import functools

import jax
import jax.numpy as jnp
from jax import lax
from jax.experimental import pallas as pl
from jax.experimental.pallas import tpu as pltpu

LANE = 128              # lane width
SUBL = 8                # sublane height
TILE = SUBL * LANE      # elements per (8, 128) tile
MAX_BLOCK_TILES = 256   # 256 * 1024 elems = 1 MiB f32 per input per grid step


def _pow_const(t, gamma: float):
    """|.|**gamma with gamma a trace-time constant; no exp/log for int gamma."""
    g_int = int(gamma)
    if float(gamma) == float(g_int) and 1 <= g_int <= 8:
        r = t
        for _ in range(g_int - 1):
            r = r * t
        return r
    if float(gamma) == 0.0:
        return jnp.ones_like(t)
    return jnp.power(t, gamma)


def _make_focal_kernel(alpha: float, gamma: float, n_tiles: int, block_tiles: int):
    needs_mask = (n_tiles % block_tiles) != 0

    def kernel(x_ref, y_ref, out_ref):
        # Upcast inside the kernel (DMA stays in the input dtype, e.g. bf16).
        x = x_ref[...].astype(jnp.float32)
        y = y_ref[...].astype(jnp.float32)

        # Single EUP exp per element, reused for sigmoid and both log-sigmoids.
        e = jnp.exp(-jnp.abs(x))                   # exp(-|x|)
        inv = 1.0 / (1.0 + e)
        probs = jnp.where(x >= 0, inv, e * inv)    # sigmoid(x)

        # Numerically-stable log sigmoid(x) / log sigmoid(-x),
        # matching torch's softplus(threshold=50) formulation.
        neg_sp = -jnp.log1p(e)                     # -softplus(-|x|)
        log_probs = jnp.minimum(x, 0.0) + neg_sp       # log sigmoid(x)
        log_1_probs = jnp.minimum(-x, 0.0) + neg_sp    # log sigmoid(-x)

        coeff = -_pow_const(jnp.abs(y - probs), gamma)
        ce = alpha * y * log_probs + (1.0 - alpha) * (1.0 - y) * log_1_probs
        loss = ce * coeff

        if needs_mask:
            # Only the (possibly overhanging) last grid step has invalid tiles.
            tile_idx = pl.program_id(0) * block_tiles + lax.broadcasted_iota(
                jnp.int32, loss.shape, 0)
            loss = jnp.where(tile_idx < n_tiles, loss, 0.0)

        # Per-block partial sums: collapse the tile axis, keep (1, 8, 128).
        out_ref[...] = jnp.sum(loss, axis=0, keepdims=True)

    return kernel


def _focal_tail_sum(x, y, alpha, gamma):
    # Plain-JAX path for the < 1024-element ragged tail (usually empty).
    x = x.astype(jnp.float32)
    y = y.astype(jnp.float32)
    probs = jax.nn.sigmoid(x)
    coeff = -_pow_const(jnp.abs(y - probs), gamma)
    ce = (alpha * y * jax.nn.log_sigmoid(x)
          + (1.0 - alpha) * (1.0 - y) * jax.nn.log_sigmoid(-x))
    return jnp.sum(ce * coeff)


@functools.partial(jax.jit, static_argnames=("alpha", "gamma", "reduction"))
def focal_loss_v2(logits, label, alpha=0.25, gamma=2.0, reduction="mean"):
    assert logits.shape == label.shape
    alpha = float(alpha)
    gamma = float(gamma)
    n = int(logits.size)

    x = logits.reshape(-1)   # free reshape, keep original dtype
    y = label.reshape(-1)

    n_tiles = n // TILE
    n_bulk = n_tiles * TILE

    total = jnp.float32(0.0)

    if n_tiles > 0:
        block_tiles = min(MAX_BLOCK_TILES, n_tiles)
        grid = pl.cdiv(n_tiles, block_tiles)

        x3 = x[:n_bulk].reshape(n_tiles, SUBL, LANE)   # no-op slice when n_bulk == n
        y3 = y[:n_bulk].reshape(n_tiles, SUBL, LANE)

        partials = pl.pallas_call(
            _make_focal_kernel(alpha, gamma, n_tiles, block_tiles),
            out_shape=jax.ShapeDtypeStruct((grid, SUBL, LANE), jnp.float32),
            grid=(grid,),
            in_specs=[
                pl.BlockSpec((block_tiles, SUBL, LANE), lambda i: (i, 0, 0)),
                pl.BlockSpec((block_tiles, SUBL, LANE), lambda i: (i, 0, 0)),
            ],
            out_specs=pl.BlockSpec((1, SUBL, LANE), lambda i: (i, 0, 0)),
            compiler_params=pltpu.CompilerParams(
                dimension_semantics=("parallel",)),
        )(x3, y3)
        total = total + jnp.sum(partials)

    if n_bulk < n:
        total = total + _focal_tail_sum(x[n_bulk:], y[n_bulk:], alpha, gamma)

    if reduction == "mean":
        return total / n
    if reduction == "sum":
        return total
    # TODO(synk): reduction='none' (elementwise output) not wired; mean/sum only.
    raise NotImplementedError(reduction)


def _reference_focal_loss(logits, label, alpha=0.25, gamma=2.0):
    x = logits.astype(jnp.float32)
    y = label.astype(jnp.float32)
    probs = jax.nn.sigmoid(x)
    coeff = -jnp.power(jnp.abs(y - probs), gamma)
    log_p = jax.nn.log_sigmoid(x)
    log_1p = jax.nn.log_sigmoid(-x)
    ce = alpha * y * log_p + (1.0 - alpha) * (1.0 - y) * log_1p
    return jnp.mean(ce * coeff)


if __name__ == "__main__":
    key = jax.random.PRNGKey(0)
    k1, k2 = jax.random.split(key)

    # Small NCHW shapes consistent with a dense-prediction focal loss.
    B, C, H, W = 2, 4, 16, 16
    logits = jax.random.normal(k1, (B, C, H, W), dtype=jnp.float32) * 3.0
    label = jax.random.bernoulli(k2, p=0.3, shape=(B, C, H, W)).astype(jnp.float32)

    out = focal_loss_v2(logits, label, alpha=0.25, gamma=2.0, reduction="mean")
    out = jax.block_until_ready(out)

    ref = _reference_focal_loss(logits, label, alpha=0.25, gamma=2.0)
    assert jnp.allclose(out, ref, rtol=1e-5, atol=1e-6), (out, ref)

    print("KERNEL_OK")
</pallas_src>

<mosaic_0001>
module attributes {stable_mosaic.version = 11 : i64} {
  func.func @kernel(%arg0: i32, %arg1: memref<2x8x128xf32, #tpu.memory_space<vmem>>, %arg2: memref<2x8x128xf32, #tpu.memory_space<vmem>>, %arg3: memref<1x8x128xf32, #tpu.memory_space<vmem>>) attributes {dimension_semantics = [#tpu.dimension_semantics<parallel>], iteration_bounds = array<i64: 1>, scalar_prefetch = 0 : i64, scratch_operands = 0 : i64, tpu.core_type = #tpu.core_type<tc>, window_params = [{transform_indices = @transform_0, window_bounds = array<i64: 2, 8, 128>}, {transform_indices = @transform_1, window_bounds = array<i64: 2, 8, 128>}, {transform_indices = @transform_2, window_bounds = array<i64: 1, 8, 128>}]} {
    %c0 = arith.constant 0 : index
    %c0_0 = arith.constant 0 : index
    %c0_1 = arith.constant 0 : index
    %0 = vector.load %arg1[%c0, %c0_0, %c0_1] : memref<2x8x128xf32, #tpu.memory_space<vmem>>, vector<2x8x128xf32>
    %c0_2 = arith.constant 0 : index
    %c0_3 = arith.constant 0 : index
    %c0_4 = arith.constant 0 : index
    %1 = vector.load %arg2[%c0_2, %c0_3, %c0_4] : memref<2x8x128xf32, #tpu.memory_space<vmem>>, vector<2x8x128xf32>
    %2 = math.absf %0 : vector<2x8x128xf32>
    %cst = arith.constant 0.000000e+00 : f32
    %3 = vector.broadcast %cst : f32 to vector<2x8x128xf32>
    %4 = arith.subf %3, %2 : vector<2x8x128xf32>
    %5 = math.exp %4 : vector<2x8x128xf32>
    %cst_5 = arith.constant 1.000000e+00 : f32
    %6 = vector.broadcast %cst_5 : f32 to vector<2x8x128xf32>
    %7 = arith.addf %6, %5 : vector<2x8x128xf32>
    %cst_6 = arith.constant 1.000000e+00 : f32
    %8 = vector.broadcast %cst_6 : f32 to vector<2x8x128xf32>
    %9 = arith.divf %8, %7 : vector<2x8x128xf32>
    %cst_7 = arith.constant 0.000000e+00 : f32
    %10 = vector.broadcast %cst_7 : f32 to vector<2x8x128xf32>
    %11 = arith.cmpf oge, %0, %10 : vector<2x8x128xf32>
    %12 = arith.mulf %5, %9 : vector<2x8x128xf32>
    %13 = arith.select %11, %9, %12 : vector<2x8x128xi1>, vector<2x8x128xf32>
    %14 = math.log1p %5 : vector<2x8x128xf32>
    %cst_8 = arith.constant 0.000000e+00 : f32
    %15 = vector.broadcast %cst_8 : f32 to vector<2x8x128xf32>
    %16 = arith.subf %15, %14 : vector<2x8x128xf32>
    %cst_9 = arith.constant 0.000000e+00 : f32
    %17 = vector.broadcast %cst_9 : f32 to vector<2x8x128xf32>
    %18 = arith.minimumf %0, %17 : vector<2x8x128xf32>
    %19 = arith.addf %18, %16 : vector<2x8x128xf32>
    %cst_10 = arith.constant 0.000000e+00 : f32
    %20 = vector.broadcast %cst_10 : f32 to vector<2x8x128xf32>
    %21 = arith.subf %20, %0 : vector<2x8x128xf32>
    %cst_11 = arith.constant 0.000000e+00 : f32
    %22 = vector.broadcast %cst_11 : f32 to vector<2x8x128xf32>
    %23 = arith.minimumf %21, %22 : vector<2x8x128xf32>
    %24 = arith.addf %23, %16 : vector<2x8x128xf32>
    %25 = arith.subf %1, %13 : vector<2x8x128xf32>
    %26 = math.absf %25 : vector<2x8x128xf32>
    %27 = arith.mulf %26, %26 : vector<2x8x128xf32>
    %cst_12 = arith.constant 0.000000e+00 : f32
    %28 = vector.broadcast %cst_12 : f32 to vector<2x8x128xf32>
    %29 = arith.subf %28, %27 : vector<2x8x128xf32>
    %cst_13 = arith.constant 2.500000e-01 : f32
    %30 = vector.broadcast %cst_13 : f32 to vector<2x8x128xf32>
    %31 = arith.mulf %30, %1 : vector<2x8x128xf32>
    %32 = arith.mulf %31, %19 : vector<2x8x128xf32>
    %cst_14 = arith.constant 1.000000e+00 : f32
    %33 = vector.broadcast %cst_14 : f32 to vector<2x8x128xf32>
    %34 = arith.subf %33, %1 : vector<2x8x128xf32>
    %cst_15 = arith.constant 7.500000e-01 : f32
    %35 = vector.broadcast %cst_15 : f32 to vector<2x8x128xf32>
    %36 = arith.mulf %35, %34 : vector<2x8x128xf32>
    %37 = arith.mulf %36, %24 : vector<2x8x128xf32>
    %38 = arith.addf %32, %37 : vector<2x8x128xf32>
    %39 = arith.mulf %38, %29 : vector<2x8x128xf32>
    %cst_16 = arith.constant dense<0.000000e+00> : vector<8x128xf32>
    %40 = vector.multi_reduction <add>, %39, %cst_16 [0] : vector<2x8x128xf32> to vector<8x128xf32>
    %41 = vector.shape_cast %40 : vector<8x128xf32> to vector<1x8x128xf32>
    %c0_17 = arith.constant 0 : index
    %c0_18 = arith.constant 0 : index
    %c0_19 = arith.constant 0 : index
    %42 = vector.load %arg3[%c0_17, %c0_18, %c0_19] : memref<1x8x128xf32, #tpu.memory_space<vmem>>, vector<1x8x128xf32>
    tpu.vector_store %arg3[%c0_17, %c0_18, %c0_19], %41 {strides = array<i32>} : memref<1x8x128xf32, #tpu.memory_space<vmem>>, vector<1x8x128xf32>,
    return
  }
  func.func @transform_0(%arg0: i32) -> (i32, i32, i32) {
    %c0_i32 = arith.constant 0 : i32
    %c0_i32_0 = arith.constant 0 : i32
    %c0_i32_1 = arith.constant 0 : i32
    return %arg0, %c0_i32, %c0_i32_0 : i32, i32, i32
  }
  func.func @transform_1(%arg0: i32) -> (i32, i32, i32) {
    %c0_i32 = arith.constant 0 : i32
    %c0_i32_0 = arith.constant 0 : i32
    %c0_i32_1 = arith.constant 0 : i32
    return %arg0, %c0_i32, %c0_i32_0 : i32, i32, i32
  }
  func.func @transform_2(%arg0: i32) -> (i32, i32, i32) {
    %c0_i32 = arith.constant 0 : i32
    %c0_i32_0 = arith.constant 0 : i32
    %c0_i32_1 = arith.constant 0 : i32
    return %arg0, %c0_i32, %c0_i32_0 : i32, i32, i32
  }
}

</mosaic_0001>

<llo_original>
// kernel: focal_loss_v2.1
$region0: #{focal_loss_v2.1}
  #allocation0 [shape = 'u32[]', space=smem, size = 0x4, offset = 0x4, fixed_abs, tag = 'smem constant byte address 0x4 - core index']
  #allocation1 [shape = 'u32[144,128]{1,0:T(1,128)}', space=vmem, size = 0x12000, scoped, tag = 'internal scratch']
  %s0 = inlined_call_operand.vmem [shape: f32[2,8,128], index: 0, kind: input, shape index: {}]
  %s1 = inlined_call_operand.vmem [shape: f32[2,8,128], index: 1, kind: input, shape index: {}]
  %s2 = inlined_call_operand.vmem [shape: f32[1,8,128], index: 2, kind: output, shape index: {}]
  %s3 = sld [smem:[#allocation0]]
  $region18: #{focal_loss_v2.1} parent=0
    _
  %s5 = ssub.s32 1, %s3
  %s6 = scalar_select 0, %s5, %s3
  // Predicated region
  $region2: #{focal_loss_v2.1} parent=0 // pred_check
    _
  $region3: #{focal_loss_v2.1} parent=0 // pred_check_branch
    %8 = sbr.rel (0) target = $region5
  $region4: #{focal_loss_v2.1} parent=0 // pred_region
    _
  $region5: #{focal_loss_v2.1} parent=0 // pred_fallthru
    _
  // Predicated region
  $region6: #{focal_loss_v2.1} parent=0 // pred_check
    _
  $region7: #{focal_loss_v2.1} parent=0 // pred_check_branch
    %10 = sbr.rel (0) target = $region9
  $region8: #{focal_loss_v2.1} parent=0 // pred_region
    _
  $region9: #{focal_loss_v2.1} parent=0 // pred_fallthru
    _
  %v11 = vld [vmem:[%s0] sm:$0xff]
  %v12 = vld [vmem:[%s0 + $0x8] sm:$0xff]
  %v13 = vld [vmem:[%s1] sm:$0xff]
  %v14 = vld [vmem:[%s1 + $0x8] sm:$0xff]
  %v15 = vand.u32 2147483647, %v11
  %v16 = vand.u32 2147483647, %v12
  %v17 = vsub.f32 0.0, %v15
  %v18 = vsub.f32 0.0, %v16
  %v19 = vmul.f32 %v17, 1.442695
  %v20 = vpow.pop %v19
  %v21 = vmul.f32 %v18, 1.442695
  %v22 = vpow.pop %v21
  %v23 = vadd.f32 %v20, 1.0
  %v24 = vadd.f32 %v22, 1.0
  %v25 = vrcp.pop %v23
  %v26 = vmul.f32 1.0, %v25
  %v27 = vrcp.pop %v24
  %v28 = vmul.f32 1.0, %v27
  %vm29 = vcmp.ge.f32.partialorder %v11, 0.0
  %vm30 = vcmp.ge.f32.partialorder %v12, 0.0
  %v31 = vmul.f32 %v20, %v26
  %v32 = vmul.f32 %v22, %v28
  %v33 = vsel %vm29, %v26, %v31
  %v34 = vsel %vm30, %v28, %v32
  %v35 = vadd.f32 %v20, 1.0
  %v36 = vlog2.pop %v35
  %v37 = vmul.f32 %v36, 0.6931472
  %v38 = vmul.f32 -0.5, %v20
  %v39 = vadd.f32 %v38, 1.0
  %v40 = vmul.f32 %v39, %v20
  %v41 = vand.u32 2147483647, %v20
  %vm42 = vcmp.lt.f32.partialorder %v41, 0.0004427343
  %v43 = vsel %vm42, %v40, %v37
  %v44 = vadd.f32 %v22, 1.0
  %v45 = vlog2.pop %v44
  %v46 = vmul.f32 %v45, 0.6931472
  %v47 = vmul.f32 -0.5, %v22
  %v48 = vadd.f32 %v47, 1.0
  %v49 = vmul.f32 %v48, %v22
  %v50 = vand.u32 2147483647, %v22
  %vm51 = vcmp.lt.f32.partialorder %v50, 0.0004427343
  %v52 = vsel %vm51, %v49, %v46
  %v53 = vsub.f32 0.0, %v43
  %v54 = vsub.f32 0.0, %v52
  %v55 = vmin.f32 %v11, 0.0
  %v56 = vmin.f32 %v12, 0.0
  %v57 = vadd.f32 %v55, %v53
  %v58 = vadd.f32 %v56, %v54
  %v59 = vsub.f32 0.0, %v11
  %v60 = vsub.f32 0.0, %v12
  %v61 = vmin.f32 %v59, 0.0
  %v62 = vmin.f32 %v60, 0.0
  %v63 = vadd.f32 %v61, %v53
  %v64 = vadd.f32 %v62, %v54
  %v65 = vsub.f32 %v13, %v33
  %v66 = vsub.f32 %v14, %v34
  %v67 = vand.u32 2147483647, %v65
  %v68 = vand.u32 2147483647, %v66
  %v69 = vmul.f32 %v67, %v67
  %v70 = vmul.f32 %v68, %v68
  %v71 = vsub.f32 0.0, %v69
  %v72 = vsub.f32 0.0, %v70
  %v73 = vmul.f32 %v13, 0.25
  %v74 = vmul.f32 %v14, 0.25
  %v75 = vmul.f32 %v73, %v57
  %v76 = vmul.f32 %v74, %v58
  %v77 = vsub.f32 1.0, %v13
  %v78 = vsub.f32 1.0, %v14
  %v79 = vmul.f32 %v77, 0.75
  %v80 = vmul.f32 %v78, 0.75
  %v81 = vmul.f32 %v79, %v63
  %v82 = vmul.f32 %v80, %v64
  %v83 = vadd.f32 %v75, %v81
  %v84 = vadd.f32 %v76, %v82
  %v85 = vmul.f32 %v83, %v71
  %v86 = vmul.f32 %v84, %v72
  %v87 = vadd.f32 %v85, %v86
  %88 = vst [vmem:[%s2] sm:$0xff] %v87
  // Predicated region
  $region10: #{focal_loss_v2.1} parent=0 // pred_check
    _
  $region11: #{focal_loss_v2.1} parent=0 // pred_check_branch
    %90 = sbr.rel (0) target = $region13
  $region12: #{focal_loss_v2.1} parent=0 // pred_region
    _
  $region13: #{focal_loss_v2.1} parent=0 // pred_fallthru
    _
  // Predicated region
  $region14: #{focal_loss_v2.1} parent=0 // pred_check
    _
  $region15: #{focal_loss_v2.1} parent=0 // pred_check_branch
    %92 = sbr.rel (0) target = $region17
  $region16: #{focal_loss_v2.1} parent=0 // pred_region
    _
  $region17: #{focal_loss_v2.1} parent=0 // pred_fallthru
    _

</llo_original>
